<compile_context>
chip_gen: v7x
topology: tpu7x:2x2x1
jax: 0.10.0
libtpu: 0.0.40
codegen_flags: <defaults>
</compile_context>

<pallas_src>
import jax
import jax.numpy as jnp
from jax.experimental import pallas as pl
from jax.experimental.pallas import tpu as pltpu


def editor_kernel(lat_ref, vec_ref, cbT_ref, hcbsq_ref, dcb_ref, out_ref):
    # ---- trans_latent = latent + vector -------------------------------------
    z = lat_ref[...] + vec_ref[...]                                    # (tm, C) f32

    # ---- VQ quantize: nearest codebook entry --------------------------------
    # full L2: ||z||^2 - 2 z.e + ||e||^2 ; drop ||z||^2 (per-row const), halve:
    #   d = 0.5*||e||^2 - z.e        -> same argmin.
    mxu_dt = cbT_ref.dtype
    dots = jnp.dot(z.astype(mxu_dt), cbT_ref[...],
                   preferred_element_type=jnp.float32)                 # (tm, n_e) MXU
    d = hcbsq_ref[...] - dots                                          # (tm, n_e)

    idx = jnp.argmin(d, axis=-1, keepdims=True)                        # (tm, 1) first-min
    onehot = (jax.lax.broadcasted_iota(jnp.int32, d.shape, 1)
              == idx).astype(dcb_ref.dtype)                            # exact in f32

    # ---- decode folded into per-codebook-entry table ------------------------
    # out = onehot @ decode(codebook)   (gather via MXU; narrow (tm, out_ch) store)
    out_ref[...] = jnp.dot(onehot, dcb_ref[...],
                           preferred_element_type=jnp.float32
                           ).astype(out_ref.dtype)                     # (tm, out_ch)


def _pick_tm(N, requested=None):
    """Tile rows: large tiles amortize per-step overhead, but keep >=4 grid steps
    (when possible) so each TensorCore pipelines; VMEM use is tiny either way."""
    if requested is not None:
        tm = min(requested, N)
        assert N % tm == 0, "N must be divisible by tm"
        return tm
    candidates = (512, 256, 128, 64, 32, 16, 8)
    for want_steps in (4, 1):
        for tm in candidates:
            if tm <= N and N % tm == 0 and N // tm >= want_steps:
                return tm
    return N


def image_prompt_editor_forward(latent_nchw, vector_nchw, codebook,
                                w1, b1, w2, b2, *, tm=None,
                                mxu_dtype=jnp.float32):
    """latent/vector: (B, C, H, W) float32.  Returns dec: (B, out_ch, H, W).

    mxu_dtype=jnp.bfloat16 halves MXU operand width (the right default on v5e,
    which has no native f32 MXU path); default f32 keeps the VQ argmin
    bit-identical to the f32 reference.
    """
    B, C, H, W = latent_nchw.shape
    n_e = codebook.shape[0]
    out_ch = w2.shape[1]
    N = B * H * W
    tm = _pick_tm(N, tm)

    # NCHW -> NHWC -> (N, C): channels on the 128-lane axis.
    lat = jnp.transpose(latent_nchw, (0, 2, 3, 1)).reshape(N, C)
    vec = jnp.transpose(vector_nchw, (0, 2, 3, 1)).reshape(N, C)

    # Fold the pointwise decoder into a per-codebook-entry table (exact because
    # decode() is row-wise and every quantized row is a codebook row).
    h = codebook @ w1 + b1[None, :]
    h = h * jax.nn.sigmoid(h)                                          # swish
    dec_cb = jnp.tanh(h @ w2 + b2[None, :]).astype(jnp.float32)        # (n_e, out_ch), f32

    # Distance-matmul operands.  The bias is computed from the same (possibly
    # bf16-rounded) codebook that feeds the MXU so distances stay consistent.
    cbT = codebook.T.astype(mxu_dtype)                                 # (C, n_e)
    cb_eff = cbT.astype(jnp.float32)
    half_cbsq = 0.5 * jnp.sum(cb_eff * cb_eff, axis=0, keepdims=True)  # (1, n_e) f32

    rows = lambda i: (i, 0)
    full = lambda i: (0, 0)

    itemsize = jnp.dtype(mxu_dtype).itemsize
    cost = pl.CostEstimate(
        flops=int(2 * N * C * n_e + 2 * N * n_e * out_ch + N * C),
        transcendentals=0,
        bytes_accessed=int(4 * (2 * N * C + N * out_ch + n_e + n_e * out_ch)
                           + itemsize * C * n_e),
    )

    out_flat = pl.pallas_call(
        editor_kernel,
        out_shape=jax.ShapeDtypeStruct((N, out_ch), jnp.float32),
        grid_spec=pltpu.PrefetchScalarGridSpec(
            num_scalar_prefetch=0,
            grid=(N // tm,),
            in_specs=[
                pl.BlockSpec((tm, C), rows),           # latent rows
                pl.BlockSpec((tm, C), rows),           # vector rows
                pl.BlockSpec((C, n_e), full),          # codebook^T (pre-transposed)
                pl.BlockSpec((1, n_e), full),          # 0.5 * ||e||^2
                pl.BlockSpec((n_e, out_ch), full),     # decoded codebook table (f32)
            ],
            out_specs=pl.BlockSpec((tm, out_ch), rows),
        ),
        compiler_params=pltpu.CompilerParams(
            dimension_semantics=("parallel",)),
        cost_estimate=cost,
    )(lat, vec, cbT, half_cbsq, dec_cb)

    # (N, out_ch) -> NHWC -> NCHW
    dec = out_flat.reshape(B, H, W, out_ch).transpose(0, 3, 1, 2)
    return dec


def reference_forward(latent_nchw, vector_nchw, codebook, w1, b1, w2, b2):
    B, C, H, W = latent_nchw.shape
    z = (latent_nchw + vector_nchw).transpose(0, 2, 3, 1).reshape(-1, C)
    d = (jnp.sum(z * z, -1, keepdims=True)
         - 2.0 * z @ codebook.T
         + jnp.sum(codebook * codebook, -1)[None, :])
    z_q = codebook[jnp.argmin(d, axis=-1)]
    h = z_q @ w1 + b1
    h = h * jax.nn.sigmoid(h)
    o = jnp.tanh(h @ w2 + b2)
    return o.reshape(B, H, W, -1).transpose(0, 3, 1, 2)


if __name__ == "__main__":
    key = jax.random.PRNGKey(0)
    B, C, H, W = 2, 32, 16, 16          # latent: (B, embed_dim, H, W)
    n_e = 128                           # codebook size
    z_ch = 32                           # decoder hidden channels
    out_ch = 3                          # decoded RGB image channels

    ks = jax.random.split(key, 7)
    latent   = jax.random.normal(ks[0], (B, C, H, W), jnp.float32)
    vector   = jax.random.normal(ks[1], (B, C, H, W), jnp.float32)
    codebook = jax.random.normal(ks[2], (n_e, C), jnp.float32)
    w1 = jax.random.normal(ks[3], (C, z_ch), jnp.float32) * 0.1
    b1 = jax.random.normal(ks[4], (z_ch,), jnp.float32) * 0.01
    w2 = jax.random.normal(ks[5], (z_ch, out_ch), jnp.float32) * 0.1
    b2 = jax.random.normal(ks[6], (out_ch,), jnp.float32) * 0.01

    dec = image_prompt_editor_forward(latent, vector, codebook, w1, b1, w2, b2)
    dec = jax.block_until_ready(dec)

    ref = reference_forward(latent, vector, codebook, w1, b1, w2, b2)
    assert dec.shape == (B, out_ch, H, W)
    assert jnp.allclose(dec, ref, atol=1e-5, rtol=1e-5)

    print("KERNEL_OK")
</pallas_src>

<mosaic_0001>
module attributes {stable_mosaic.version = 11 : i64} {
  func.func @editor_kernel(%arg0: i32, %arg1: memref<128x32xf32, #tpu.memory_space<vmem>>, %arg2: memref<128x32xf32, #tpu.memory_space<vmem>>, %arg3: memref<32x128xf32, #tpu.memory_space<vmem>>, %arg4: memref<1x128xf32, #tpu.memory_space<vmem>>, %arg5: memref<128x3xf32, #tpu.memory_space<vmem>>, %arg6: memref<128x3xf32, #tpu.memory_space<vmem>>) attributes {dimension_semantics = [#tpu.dimension_semantics<parallel>], iteration_bounds = array<i64: 4>, scalar_prefetch = 0 : i64, scratch_operands = 0 : i64, tpu.core_type = #tpu.core_type<tc>, window_params = [{transform_indices = @transform_0, window_bounds = array<i64: 128, 32>}, {transform_indices = @transform_1, window_bounds = array<i64: 128, 32>}, {pipeline_mode = #tpu.pipeline_mode<synchronous>, transform_indices = @transform_2, window_bounds = array<i64: 32, 128>}, {pipeline_mode = #tpu.pipeline_mode<synchronous>, transform_indices = @transform_3, window_bounds = array<i64: 1, 128>}, {pipeline_mode = #tpu.pipeline_mode<synchronous>, transform_indices = @transform_4, window_bounds = array<i64: 128, 3>}, {transform_indices = @transform_5, window_bounds = array<i64: 128, 3>}]} {
    %c0 = arith.constant 0 : index
    %c0_0 = arith.constant 0 : index
    %0 = vector.load %arg1[%c0, %c0_0] : memref<128x32xf32, #tpu.memory_space<vmem>>, vector<128x32xf32>
    %c0_1 = arith.constant 0 : index
    %c0_2 = arith.constant 0 : index
    %1 = vector.load %arg2[%c0_1, %c0_2] : memref<128x32xf32, #tpu.memory_space<vmem>>, vector<128x32xf32>
    %2 = arith.addf %0, %1 : vector<128x32xf32>
    %c0_3 = arith.constant 0 : index
    %c0_4 = arith.constant 0 : index
    %3 = vector.load %arg3[%c0_3, %c0_4] : memref<32x128xf32, #tpu.memory_space<vmem>>, vector<32x128xf32>
    %cst = arith.constant dense<0.000000e+00> : vector<128x128xf32>
    %4 = tpu.matmul %2, %3, %cst {dimension_numbers = #tpu.dot_dimension_numbers<[1], [0], [0], [1], [0, 0, 1, 1], [], []>} : vector<128x32xf32>, vector<32x128xf32>, vector<128x128xf32> -> vector<128x128xf32>
    %c0_5 = arith.constant 0 : index
    %c0_6 = arith.constant 0 : index
    %5 = vector.load %arg4[%c0_5, %c0_6] : memref<1x128xf32, #tpu.memory_space<vmem>>, vector<1x128xf32>
    %6 = vector.broadcast %5 : vector<1x128xf32> to vector<128x128xf32>
    %7 = arith.subf %6, %4 : vector<128x128xf32>
    %8 = tpu.reduce_index %7 {axis = 1 : i32, kind = #tpu.reduction_kind<arg_min>} : vector<128x128xf32> -> vector<128xi32>
    %9 = vector.shape_cast %8 : vector<128xi32> to vector<128x1xi32>
    %10 = tpu.iota {dimensions = array<i32: 1>} : vector<128x128xi32>
    %11 = vector.broadcast %9 : vector<128x1xi32> to vector<128x128xi32>
    %12 = arith.cmpi eq, %10, %11 : vector<128x128xi32>
    %13 = arith.extui %12 : vector<128x128xi1> to vector<128x128xi32>
    %14 = arith.sitofp %13 : vector<128x128xi32> to vector<128x128xf32>
    %c0_7 = arith.constant 0 : index
    %c0_8 = arith.constant 0 : index
    %15 = vector.load %arg5[%c0_7, %c0_8] : memref<128x3xf32, #tpu.memory_space<vmem>>, vector<128x3xf32>
    %cst_9 = arith.constant dense<0.000000e+00> : vector<128x3xf32>
    %16 = tpu.matmul %14, %15, %cst_9 {dimension_numbers = #tpu.dot_dimension_numbers<[1], [0], [0], [1], [0, 0, 1, 1], [], []>} : vector<128x128xf32>, vector<128x3xf32>, vector<128x3xf32> -> vector<128x3xf32>
    %c0_10 = arith.constant 0 : index
    %c0_11 = arith.constant 0 : index
    %17 = vector.load %arg6[%c0_10, %c0_11] : memref<128x3xf32, #tpu.memory_space<vmem>>, vector<128x3xf32>
    tpu.vector_store %arg6[%c0_10, %c0_11], %16 {strides = array<i32>} : memref<128x3xf32, #tpu.memory_space<vmem>>, vector<128x3xf32>,
    return
  }
  func.func @transform_0(%arg0: i32) -> (i32, i32) {
    %c0_i32 = arith.constant 0 : i32
    %c0_i32_0 = arith.constant 0 : i32
    return %arg0, %c0_i32 : i32, i32
  }
  func.func @transform_1(%arg0: i32) -> (i32, i32) {
    %c0_i32 = arith.constant 0 : i32
    %c0_i32_0 = arith.constant 0 : i32
    return %arg0, %c0_i32 : i32, i32
  }
  func.func @transform_2(%arg0: i32) -> (i32, i32) {
    %c0_i32 = arith.constant 0 : i32
    %c0_i32_0 = arith.constant 0 : i32
    %c0_i32_1 = arith.constant 0 : i32
    return %c0_i32, %c0_i32_0 : i32, i32
  }
  func.func @transform_3(%arg0: i32) -> (i32, i32) {
    %c0_i32 = arith.constant 0 : i32
    %c0_i32_0 = arith.constant 0 : i32
    %c0_i32_1 = arith.constant 0 : i32
    return %c0_i32, %c0_i32_0 : i32, i32
  }
  func.func @transform_4(%arg0: i32) -> (i32, i32) {
    %c0_i32 = arith.constant 0 : i32
    %c0_i32_0 = arith.constant 0 : i32
    %c0_i32_1 = arith.constant 0 : i32
    return %c0_i32, %c0_i32_0 : i32, i32
  }
  func.func @transform_5(%arg0: i32) -> (i32, i32) {
    %c0_i32 = arith.constant 0 : i32
    %c0_i32_0 = arith.constant 0 : i32
    return %arg0, %c0_i32 : i32, i32
  }
}

</mosaic_0001>

<llo_original>
// kernel: tpu_custom_call.1
$region0: #{tpu_custom_call.1}
  #allocation0 [shape = 'u32[]', space=smem, size = 0x4, offset = 0x4, fixed_abs, tag = 'smem constant byte address 0x4 - core index']
  #allocation1 [shape = 'u32[144,128]{1,0:T(1,128)}', space=vmem, size = 0x12000, scoped, tag = 'internal scratch']
  %s0 = inlined_call_operand.vmem [shape: f32[512,32], index: 0, kind: input, shape index: {}]
  %s1 = inlined_call_operand.vmem [shape: f32[512,32], index: 1, kind: input, shape index: {}]
  %s2 = inlined_call_operand.vmem [shape: f32[32,128], index: 2, kind: input, shape index: {}]
  %s3 = inlined_call_operand.vmem [shape: f32[1,128], index: 3, kind: input, shape index: {}]
  %s4 = inlined_call_operand.vmem [shape: f32[128,3], index: 4, kind: input, shape index: {}]
  %s5 = inlined_call_operand.vmem [shape: f32[512,3], index: 5, kind: output, shape index: {}]
  %s6 = sld [smem:[#allocation0]]
  $region53: #{tpu_custom_call.1} parent=0
    _
  %s8 = ssub.s32 1, %s6
  %s9 = scalar_select 0, %s8, %s6
  loop: start=0, step=1, limit=6
  $region2: #{tpu_custom_call.1} parent=0 // loop_pre_header
    _
  $region3: #{tpu_custom_call.1} parent=0 // loop_header
    %s11 = sphi 0, %s15
    %p12 = scmp.ge.s32.totalorder %s11, 6
    %s21 = sphi 0, %s23
    %s24 = sphi 0, %s21
    %s25 = sphi 0, %s24
    %s41 = sphi 0, %s25
    %s47 = sphi 0, %s49
    %s50 = sphi 0, %s47
    %s51 = sphi 0, %s50
    %s67 = sphi 0, %s51
    %s71 = sphi 0, %s71
    %s73 = sphi 0, %s71
    %s74 = sphi 0, %s73
    %s88 = sphi 0, %s74
    %s92 = sphi 0, %s92
    %s94 = sphi 0, %s92
    %s95 = sphi 0, %s94
    %s109 = sphi 0, %s95
    %s113 = sphi 0, %s113
    %s115 = sphi 0, %s113
    %s116 = sphi 0, %s115
    %s130 = sphi 0, %s116
    %s136 = sphi 0, %s138
    %s139 = sphi 0, %s136
    %s140 = sphi 0, %s139
    %s156 = sphi 0, %s140
  $region4: #{tpu_custom_call.1} parent=0 // loop_header_branch
    %14 = sbr.rel (%p12) target = $region8
  $region5: #{tpu_custom_call.1} parent=0 // loop_body
    %s16 = ssub.s32 %s11, 1
    %s17 = ssub.s32 %s11, 2
    %s18 = sadd.s32 %s11, 1
    %s19 = ssub.s32 %s11, %s18
    %p20 = scmp.eq.s32.totalorder %s19, 0
    %s22 = sadd.s32 %s21, 1
    %s23 = scalar_select %p20, %s21, %s22
    %p26 = pneg %p20
    %p27 = scmp.eq.s32.totalorder %s11, 3
    %p28 = por %p26, %p27
    %p29 = scmp.ne.s32.totalorder %s21, %s24
    %p30 = scmp.eq.s32.totalorder %s11, 0
    %p31 = por %p29, %p30
    %p32 = scmp.ne.s32.totalorder %s21, %s24
    %p33 = scmp.eq.s32.totalorder %s16, 3
    %p34 = por %p32, %p33
    %p35 = scmp.ne.s32.totalorder %s24, %s25
    %p36 = scmp.eq.s32.totalorder %s16, 0
    %p37 = por %p35, %p36
    %p38 = scmp.ne.s32.totalorder %s24, %s25
    %p39 = scmp.eq.s32.totalorder %s17, 3
    %p40 = por %p38, %p39
    %p42 = scmp.ne.s32.totalorder %s25, %s41
    %p43 = scmp.eq.s32.totalorder %s17, 0
    %p44 = por %p42, %p43
    %s45 = ssub.s32 %s11, %s18
    %p46 = scmp.eq.s32.totalorder %s45, 0
    %s48 = sadd.s32 %s47, 1
    %s49 = scalar_select %p46, %s47, %s48
    %p52 = pneg %p46
    %p53 = scmp.eq.s32.totalorder %s11, 3
    %p54 = por %p52, %p53
    %p55 = scmp.ne.s32.totalorder %s47, %s50
    %p56 = scmp.eq.s32.totalorder %s11, 0
    %p57 = por %p55, %p56
    %p58 = scmp.ne.s32.totalorder %s47, %s50
    %p59 = scmp.eq.s32.totalorder %s16, 3
    %p60 = por %p58, %p59
    %p61 = scmp.ne.s32.totalorder %s50, %s51
    %p62 = scmp.eq.s32.totalorder %s16, 0
    %p63 = por %p61, %p62
    %p64 = scmp.ne.s32.totalorder %s50, %s51
    %p65 = scmp.eq.s32.totalorder %s17, 3
    %p66 = por %p64, %p65
    %p68 = scmp.ne.s32.totalorder %s51, %s67
    %p69 = scmp.eq.s32.totalorder %s17, 0
    %p70 = por %p68, %p69
    %s72 = sadd.s32 %s71, 1
    %p75 = scmp.eq.s32.totalorder %s11, 3
    %p76 = scmp.ne.s32.totalorder %s71, %s73
    %p77 = scmp.eq.s32.totalorder %s11, 0
    %p78 = por %p76, %p77
    %p79 = scmp.ne.s32.totalorder %s71, %s73
    %p80 = scmp.eq.s32.totalorder %s16, 3
    %p81 = por %p79, %p80
    %p82 = scmp.ne.s32.totalorder %s73, %s74
    %p83 = scmp.eq.s32.totalorder %s16, 0
    %p84 = por %p82, %p83
    %p85 = scmp.ne.s32.totalorder %s73, %s74
    %p86 = scmp.eq.s32.totalorder %s17, 3
    %p87 = por %p85, %p86
    %p89 = scmp.ne.s32.totalorder %s74, %s88
    %p90 = scmp.eq.s32.totalorder %s17, 0
    %p91 = por %p89, %p90
    %s93 = sadd.s32 %s92, 1
    %p96 = scmp.eq.s32.totalorder %s11, 3
    %p97 = scmp.ne.s32.totalorder %s92, %s94
    %p98 = scmp.eq.s32.totalorder %s11, 0
    %p99 = por %p97, %p98
    %p100 = scmp.ne.s32.totalorder %s92, %s94
    %p101 = scmp.eq.s32.totalorder %s16, 3
    %p102 = por %p100, %p101
    %p103 = scmp.ne.s32.totalorder %s94, %s95
    %p104 = scmp.eq.s32.totalorder %s16, 0
    %p105 = por %p103, %p104
    %p106 = scmp.ne.s32.totalorder %s94, %s95
    %p107 = scmp.eq.s32.totalorder %s17, 3
    %p108 = por %p106, %p107
    %p110 = scmp.ne.s32.totalorder %s95, %s109
    %p111 = scmp.eq.s32.totalorder %s17, 0
    %p112 = por %p110, %p111
    %s114 = sadd.s32 %s113, 1
    %p117 = scmp.eq.s32.totalorder %s11, 3
    %p118 = scmp.ne.s32.totalorder %s113, %s115
    %p119 = scmp.eq.s32.totalorder %s11, 0
    %p120 = por %p118, %p119
    %p121 = scmp.ne.s32.totalorder %s113, %s115
    %p122 = scmp.eq.s32.totalorder %s16, 3
    %p123 = por %p121, %p122
    %p124 = scmp.ne.s32.totalorder %s115, %s116
    %p125 = scmp.eq.s32.totalorder %s16, 0
    %p126 = por %p124, %p125
    %p127 = scmp.ne.s32.totalorder %s115, %s116
    %p128 = scmp.eq.s32.totalorder %s17, 3
    %p129 = por %p127, %p128
    %p131 = scmp.ne.s32.totalorder %s116, %s130
    %p132 = scmp.eq.s32.totalorder %s17, 0
    %p133 = por %p131, %p132
    %s134 = ssub.s32 %s11, %s18
    %p135 = scmp.eq.s32.totalorder %s134, 0
    %s137 = sadd.s32 %s136, 1
    %s138 = scalar_select %p135, %s136, %s137
    %p141 = pneg %p135
    %p142 = scmp.eq.s32.totalorder %s11, 3
    %p143 = por %p141, %p142
    %p144 = scmp.ne.s32.totalorder %s136, %s139
    %p145 = scmp.eq.s32.totalorder %s11, 0
    %p146 = por %p144, %p145
    %p147 = scmp.ne.s32.totalorder %s136, %s139
    %p148 = scmp.eq.s32.totalorder %s16, 3
    %p149 = por %p147, %p148
    %p150 = scmp.ne.s32.totalorder %s139, %s140
    %p151 = scmp.eq.s32.totalorder %s16, 0
    %p152 = por %p150, %p151
    %p153 = scmp.ne.s32.totalorder %s139, %s140
    %p154 = scmp.eq.s32.totalorder %s17, 3
    %p155 = por %p153, %p154
    %p157 = scmp.ne.s32.totalorder %s140, %s156
    %p158 = scmp.eq.s32.totalorder %s17, 0
    %p159 = por %p157, %p158
    %p160 = scmp.le.s32.totalorder 1, %s11
    %p161 = scmp.lt.s32.totalorder %s11, 5
    %p162 = pnand %p160, %p161
    %p163 = pneg %p162
    // Predicated region
    $region9: #{tpu_custom_call.1} parent=5 // pred_check
      _
    $region10: #{tpu_custom_call.1} parent=5 // pred_check_branch
      %165 = sbr.rel (%p162) target = $region12
    $region11: #{tpu_custom_call.1} parent=5 // pred_region
      %s166 = ssub.s32 %s11, 1
      // Predicated region
      $region13: #{tpu_custom_call.1} parent=11 // pred_check
        %p167 = pneg %p84
      $region14: #{tpu_custom_call.1} parent=11 // pred_check_branch
        %169 = sbr.rel (%p167) target = $region16
      $region15: #{tpu_custom_call.1} parent=11 // pred_region
        _
      $region16: #{tpu_custom_call.1} parent=11 // pred_fallthru
        _
      // Predicated region
      $region17: #{tpu_custom_call.1} parent=11 // pred_check
        %p170 = pneg %p105
      $region18: #{tpu_custom_call.1} parent=11 // pred_check_branch
        %172 = sbr.rel (%p170) target = $region20
      $region19: #{tpu_custom_call.1} parent=11 // pred_region
        _
      $region20: #{tpu_custom_call.1} parent=11 // pred_fallthru
        _
      // Predicated region
      $region21: #{tpu_custom_call.1} parent=11 // pred_check
        %p173 = pneg %p126
      $region22: #{tpu_custom_call.1} parent=11 // pred_check_branch
        %175 = sbr.rel (%p173) target = $region24
      $region23: #{tpu_custom_call.1} parent=11 // pred_region
        _
      $region24: #{tpu_custom_call.1} parent=11 // pred_fallthru
        _
    $region12: #{tpu_custom_call.1} parent=5 // pred_fallthru
      _
    %p176 = scmp.lt.s32.totalorder %s11, 4
    // Predicated region
    $region25: #{tpu_custom_call.1} parent=5 // pred_check
      %p177 = pneg %p176
    $region26: #{tpu_custom_call.1} parent=5 // pred_check_branch
      %179 = sbr.rel (%p177) target = $region28
    $region27: #{tpu_custom_call.1} parent=5 // pred_region
      // Predicated region
      $region29: #{tpu_custom_call.1} parent=27 // pred_check
        %p180 = pneg %p31
      $region30: #{tpu_custom_call.1} parent=27 // pred_check_branch
        %182 = sbr.rel (%p180) target = $region32
      $region31: #{tpu_custom_call.1} parent=27 // pred_region
        %s183 = smul.u32 16, %s11
        %p184 = scmp.lt.s32.totalorder %s183, 63
        %s185 = scalar_select %p184, %s183, 63
        %s186 = smul.addr %s185, 8
        %s187 = scalar_lea.vmem %s0, %s186
        %s188 = smul.u32 16, %s11
      $region32: #{tpu_custom_call.1} parent=27 // pred_fallthru
        _
      // Predicated region
      $region33: #{tpu_custom_call.1} parent=27 // pred_check
        %p189 = pneg %p57
      $region34: #{tpu_custom_call.1} parent=27 // pred_check_branch
        %191 = sbr.rel (%p189) target = $region36
      $region35: #{tpu_custom_call.1} parent=27 // pred_region
        %s192 = smul.u32 16, %s11
        %p193 = scmp.lt.s32.totalorder %s192, 63
        %s194 = scalar_select %p193, %s192, 63
        %s195 = smul.addr %s194, 8
        %s196 = scalar_lea.vmem %s1, %s195
        %s197 = smul.u32 16, %s11
      $region36: #{tpu_custom_call.1} parent=27 // pred_fallthru
        _
    $region28: #{tpu_custom_call.1} parent=5 // pred_fallthru
      _
    %p198 = scmp.le.s32.totalorder 1, %s11
    %p199 = scmp.lt.s32.totalorder %s11, 5
    %p200 = pnand %p198, %p199
    %p201 = pneg %p200
    // Predicated region
    $region37: #{tpu_custom_call.1} parent=5 // pred_check
      _
    $region38: #{tpu_custom_call.1} parent=5 // pred_check_branch
      %203 = sbr.rel (%p200) target = $region40
    $region39: #{tpu_custom_call.1} parent=5 // pred_region
      %s204 = ssub.s32 %s11, 1
      %s205 = smul.u32 16, %s16
      %p206 = scmp.lt.s32.totalorder %s205, 63
      %s207 = scalar_select %p206, %s205, 63
      %s208 = smul.addr %s207, 8
      %s209 = scalar_lea.vmem %s0, %s208
      %p210 = pneg %p37
      %p211 = pneg %p34
      %s212 = smul.u32 16, %s16
      %p213 = scmp.lt.s32.totalorder %s212, 63
      %s214 = scalar_select %p213, %s212, 63
      %s215 = smul.addr %s214, 8
      %s216 = scalar_lea.vmem %s1, %s215
      %p217 = pneg %p63
      %p218 = pneg %p60
      %p219 = pneg %p84
      %p220 = pneg %p81
      %p221 = pneg %p105
      %p222 = pneg %p102
      %p223 = pneg %p126
      %p224 = pneg %p123
      %p225 = pneg %p152
      %p226 = pneg %p149
      %s227 = smul.u32 16, %s16
      %p228 = scmp.lt.s32.totalorder %s227, 63
      %s229 = scalar_select %p228, %s227, 63
      %s230 = smul.addr %s229, 8
      %s231 = scalar_lea.vmem %s5, %s230
      %s232 = smul.u32 16, %s16
      %p233 = scmp.lt.s32.totalorder %s232, 63
      %s234 = scalar_select %p233, %s232, 63
      %s235 = smul.addr %s234, 8
      %s236 = scalar_lea.vmem %s0, %s235
      %s237 = smul.u32 16, %s16
      %s238 = smul.u32 16, %s16
      %p239 = scmp.lt.s32.totalorder %s238, 63
      %s240 = scalar_select %p239, %s238, 63
      %s241 = smul.addr %s240, 8
      %s242 = scalar_lea.vmem %s1, %s241
      %s243 = smul.u32 16, %s16
      %s244 = smul.u32 16, %s16
      %p245 = scmp.lt.s32.totalorder %s244, 63
      %s246 = scalar_select %p245, %s244, 63
      %s247 = smul.addr %s246, 8
      %s248 = scalar_lea.vmem %s5, %s247
      %s249 = smul.u32 16, %s16
      %v250 = vld [vmem:[%s236] sm:$0xff]
      %v251 = vld [vmem:[%s236 + $0x8] sm:$0xff]
      %v252 = vld [vmem:[%s236 + $0x10] sm:$0xff]
      %v253 = vld [vmem:[%s236 + $0x18] sm:$0xff]
      %v254 = vld [vmem:[%s236 + $0x20] sm:$0xff]
      %v255 = vld [vmem:[%s236 + $0x28] sm:$0xff]
      %v256 = vld [vmem:[%s236 + $0x30] sm:$0xff]
      %v257 = vld [vmem:[%s236 + $0x38] sm:$0xff]
      %v258 = vld [vmem:[%s236 + $0x40] sm:$0xff]
      %v259 = vld [vmem:[%s236 + $0x48] sm:$0xff]
      %v260 = vld [vmem:[%s236 + $0x50] sm:$0xff]
      %v261 = vld [vmem:[%s236 + $0x58] sm:$0xff]
      %v262 = vld [vmem:[%s236 + $0x60] sm:$0xff]
      %v263 = vld [vmem:[%s236 + $0x68] sm:$0xff]
      %v264 = vld [vmem:[%s236 + $0x70] sm:$0xff]
      %v265 = vld [vmem:[%s236 + $0x78] sm:$0xff]
      %v266 = vld [vmem:[%s242] sm:$0xff]
      %v267 = vld [vmem:[%s242 + $0x8] sm:$0xff]
      %v268 = vld [vmem:[%s242 + $0x10] sm:$0xff]
      %v269 = vld [vmem:[%s242 + $0x18] sm:$0xff]
      %v270 = vld [vmem:[%s242 + $0x20] sm:$0xff]
      %v271 = vld [vmem:[%s242 + $0x28] sm:$0xff]
      %v272 = vld [vmem:[%s242 + $0x30] sm:$0xff]
      %v273 = vld [vmem:[%s242 + $0x38] sm:$0xff]
      %v274 = vld [vmem:[%s242 + $0x40] sm:$0xff]
      %v275 = vld [vmem:[%s242 + $0x48] sm:$0xff]
      %v276 = vld [vmem:[%s242 + $0x50] sm:$0xff]
      %v277 = vld [vmem:[%s242 + $0x58] sm:$0xff]
      %v278 = vld [vmem:[%s242 + $0x60] sm:$0xff]
      %v279 = vld [vmem:[%s242 + $0x68] sm:$0xff]
      %v280 = vld [vmem:[%s242 + $0x70] sm:$0xff]
      %v281 = vld [vmem:[%s242 + $0x78] sm:$0xff]
      %v282 = vadd.f32 %v250, %v266
      %v283 = vadd.f32 %v251, %v267
      %v284 = vadd.f32 %v252, %v268
      %v285 = vadd.f32 %v253, %v269
      %v286 = vadd.f32 %v254, %v270
      %v287 = vadd.f32 %v255, %v271
      %v288 = vadd.f32 %v256, %v272
      %v289 = vadd.f32 %v257, %v273
      %v290 = vadd.f32 %v258, %v274
      %v291 = vadd.f32 %v259, %v275
      %v292 = vadd.f32 %v260, %v276
      %v293 = vadd.f32 %v261, %v277
      %v294 = vadd.f32 %v262, %v278
      %v295 = vadd.f32 %v263, %v279
      %v296 = vadd.f32 %v264, %v280
      %v297 = vadd.f32 %v265, %v281
      %v298 = vld [vmem:[%s2] sm:$0xff]
      %v299 = vld [vmem:[%s2 + $0x8] sm:$0xff]
      %v300 = vld [vmem:[%s2 + $0x10] sm:$0xff]
      %v301 = vld [vmem:[%s2 + $0x18] sm:$0xff]
      %vm302 = vcmask 261120
      %v304 = vsel %vm302, %v282, 0
      %v307 = vsel %vm302, %v283, 0
      %v310 = vsel %vm302, %v284, 0
      %v313 = vsel %vm302, %v285, 0
      %v316 = vsel %vm302, %v286, 0
      %v319 = vsel %vm302, %v287, 0
      %v322 = vsel %vm302, %v288, 0
      %v325 = vsel %vm302, %v289, 0
      %v328 = vsel %vm302, %v290, 0
      %v331 = vsel %vm302, %v291, 0
      %v334 = vsel %vm302, %v292, 0
      %v337 = vsel %vm302, %v293, 0
      %v340 = vsel %vm302, %v294, 0
      %v343 = vsel %vm302, %v295, 0
      %v346 = vsel %vm302, %v296, 0
      %v349 = vsel %vm302, %v297, 0
      %351 = vmatprep.subr.mxu0 0.0
      %352 = vmatpush1.msra.mxu0 %v298
      %353 = vmatprep.subr.mxu0 0.0
      %354 = vmatpush1.msra.mxu0 %v299
      %355 = vmatprep.subr.mxu0 0.0
      %356 = vmatpush1.msra.mxu0 %v300
      %357 = vmatprep.subr.mxu0 0.0
      %358 = vmatpush1.msra.mxu0 %v301
      %359 = vmatprep.subr.mxu0 0.0
      %360 = vmatpush1.msra.mxu0 0.0
      %361 = vmatprep.subr.mxu0 0.0
      %362 = vmatpush1.msra.mxu0 0.0
      %363 = vmatprep.subr.mxu0 0.0
      %364 = vmatpush1.msra.mxu0 0.0
      %365 = vmatprep.subr.mxu0 0.0
      %366 = vmatpush1.msra.mxu0 0.0
      %367 = vmatprep.subr.mxu0 0.0
      %368 = vmatpush1.msra.mxu0 0.0
      %369 = vmatprep.subr.mxu0 0.0
      %370 = vmatpush1.msra.mxu0 0.0
      %371 = vmatprep.subr.mxu0 0.0
      %372 = vmatpush1.msra.mxu0 0.0
      %373 = vmatprep.subr.mxu0 0.0
      %374 = vmatpush1.msra.mxu0 0.0
      %375 = vmatprep.subr.mxu0 0.0
      %376 = vmatpush1.msra.mxu0 0.0
      %377 = vmatprep.subr.mxu0 0.0
      %378 = vmatpush1.msra.mxu0 0.0
      %379 = vmatprep.subr.mxu0 0.0
      %380 = vmatpush1.msra.mxu0 0.0
      %381 = vmatprep.subr.mxu0 0.0
      %382 = vmatpush1.msra.mxu0 0.0
      %383 = vmatprep.subr.mxu0 0.0
      %384 = vmatpush1.msra.mxu0 0.0
      %385 = vmatprep.subr.mxu0 0.0
      %386 = vmatpush1.msra.mxu0 0.0
      %387 = vmatprep.subr.mxu0 0.0
      %388 = vmatpush1.msra.mxu0 0.0
      %389 = vmatprep.subr.mxu0 0.0
      %390 = vmatpush1.msra.mxu0 0.0
      %391 = vmatprep.subr.mxu0 0.0
      %392 = vmatpush1.msra.mxu0 0.0
      %393 = vmatprep.subr.mxu0 0.0
      %394 = vmatpush1.msra.mxu0 0.0
      %395 = vmatprep.subr.mxu0 0.0
      %396 = vmatpush1.msra.mxu0 0.0
      %397 = vmatprep.subr.mxu0 0.0
      %398 = vmatpush1.msra.mxu0 0.0
      %399 = vmatprep.subr.mxu0 0.0
      %400 = vmatpush1.msra.mxu0 0.0
      %401 = vmatprep.subr.mxu0 0.0
      %402 = vmatpush1.msra.mxu0 0.0
      %403 = vmatprep.subr.mxu0 0.0
      %404 = vmatpush1.msra.mxu0 0.0
      %405 = vmatprep.subr.mxu0 0.0
      %406 = vmatpush1.msra.mxu0 0.0
      %407 = vmatprep.subr.mxu0 0.0
      %408 = vmatpush1.msra.mxu0 0.0
      %409 = vmatprep.subr.mxu0 0.0
      %410 = vmatpush1.msra.mxu0 0.0
      %411 = vmatprep.subr.mxu0 0.0
      %412 = vmatpush1.msra.mxu0 0.0
      %413 = vmatprep.subr.mxu0 0.0
      %414 = vmatpush1.msra.mxu0 0.0
      %415 = vmatprep.mubr.f32.mxu0 0.0
      %416 = vmatmul.mubr.f32.gmra.mrb[0].mxu0 %v304
      %v417 = vpop.f32.mrb[0].mxu0
      %v418 = vadd.f32 0.0, %v417
      %v419 = vpop.f32.mrb[0].mxu0
      %420 = vmatprep.mubr.f32.mxu0 0.0
      %421 = vmatmul.mubr.f32.gmra.mrb[0].mxu0 %v307
      %v422 = vpop.f32.mrb[0].mxu0
      %v423 = vadd.f32 0.0, %v422
      %v424 = vpop.f32.mrb[0].mxu0
      %425 = vmatprep.mubr.f32.mxu0 0.0
      %426 = vmatmul.mubr.f32.gmra.mrb[0].mxu0 %v310
      %v427 = vpop.f32.mrb[0].mxu0
      %v428 = vadd.f32 0.0, %v427
      %v429 = vpop.f32.mrb[0].mxu0
      %430 = vmatprep.mubr.f32.mxu0 0.0
      %431 = vmatmul.mubr.f32.gmra.mrb[0].mxu0 %v313
      %v432 = vpop.f32.mrb[0].mxu0
      %v433 = vadd.f32 0.0, %v432
      %v434 = vpop.f32.mrb[0].mxu0
      %435 = vmatprep.mubr.f32.mxu0 0.0
      %436 = vmatmul.mubr.f32.gmra.mrb[0].mxu0 %v316
      %v437 = vpop.f32.mrb[0].mxu0
      %v438 = vadd.f32 0.0, %v437
      %v439 = vpop.f32.mrb[0].mxu0
      %440 = vmatprep.mubr.f32.mxu0 0.0
      %441 = vmatmul.mubr.f32.gmra.mrb[0].mxu0 %v319
      %v442 = vpop.f32.mrb[0].mxu0
      %v443 = vadd.f32 0.0, %v442
      %v444 = vpop.f32.mrb[0].mxu0
      %445 = vmatprep.mubr.f32.mxu0 0.0
      %446 = vmatmul.mubr.f32.gmra.mrb[0].mxu0 %v322
      %v447 = vpop.f32.mrb[0].mxu0
      %v448 = vadd.f32 0.0, %v447
      %v449 = vpop.f32.mrb[0].mxu0
      %450 = vmatprep.mubr.f32.mxu0 0.0
      %451 = vmatmul.mubr.f32.gmra.mrb[0].mxu0 %v325
      %v452 = vpop.f32.mrb[0].mxu0
      %v453 = vadd.f32 0.0, %v452
      %v454 = vpop.f32.mrb[0].mxu0
      %455 = vmatprep.mubr.f32.mxu0 0.0
      %456 = vmatmul.mubr.f32.gmra.mrb[0].mxu0 %v328
      %v457 = vpop.f32.mrb[0].mxu0
      %v458 = vadd.f32 0.0, %v457
      %v459 = vpop.f32.mrb[0].mxu0
      %460 = vmatprep.mubr.f32.mxu0 0.0
      %461 = vmatmul.mubr.f32.gmra.mrb[0].mxu0 %v331
      %v462 = vpop.f32.mrb[0].mxu0
      %v463 = vadd.f32 0.0, %v462
      %v464 = vpop.f32.mrb[0].mxu0
      %465 = vmatprep.mubr.f32.mxu0 0.0
      %466 = vmatmul.mubr.f32.gmra.mrb[0].mxu0 %v334
      %v467 = vpop.f32.mrb[0].mxu0
      %v468 = vadd.f32 0.0, %v467
      %v469 = vpop.f32.mrb[0].mxu0
      %470 = vmatprep.mubr.f32.mxu0 0.0
      %471 = vmatmul.mubr.f32.gmra.mrb[0].mxu0 %v337
      %v472 = vpop.f32.mrb[0].mxu0
      %v473 = vadd.f32 0.0, %v472
      %v474 = vpop.f32.mrb[0].mxu0
      %475 = vmatprep.mubr.f32.mxu0 0.0
      %476 = vmatmul.mubr.f32.gmra.mrb[0].mxu0 %v340
      %v477 = vpop.f32.mrb[0].mxu0
      %v478 = vadd.f32 0.0, %v477
      %v479 = vpop.f32.mrb[0].mxu0
      %480 = vmatprep.mubr.f32.mxu0 0.0
      %481 = vmatmul.mubr.f32.gmra.mrb[0].mxu0 %v343
      %v482 = vpop.f32.mrb[0].mxu0
      %v483 = vadd.f32 0.0, %v482
      %v484 = vpop.f32.mrb[0].mxu0
      %485 = vmatprep.mubr.f32.mxu0 0.0
      %486 = vmatmul.mubr.f32.gmra.mrb[0].mxu0 %v346
      %v487 = vpop.f32.mrb[0].mxu0
      %v488 = vadd.f32 0.0, %v487
      %v489 = vpop.f32.mrb[0].mxu0
      %490 = vmatprep.mubr.f32.mxu0 0.0
      %491 = vmatmul.mubr.f32.gmra.mrb[0].mxu0 %v349
      %v492 = vpop.f32.mrb[0].mxu0
      %v493 = vadd.f32 0.0, %v492
      %v494 = vpop.f32.mrb[0].mxu0
      %495 = vdwg.mxu0
      %v496 = vld [vmem:[%s3] sm:$0x1]
      %v498 = vlaneseq
      %v499 = vshrl.u32 %v498, 7
      %v500 = vsub.s32 0, %v499
      %v501 = vrot.slane %v496, %v500
      %v503 = vsub.f32 %v501, %v418
      %v504 = vsub.f32 %v501, %v423
      %v505 = vsub.f32 %v501, %v428
      %v506 = vsub.f32 %v501, %v433
      %v507 = vsub.f32 %v501, %v438
      %v508 = vsub.f32 %v501, %v443
      %v509 = vsub.f32 %v501, %v448
      %v510 = vsub.f32 %v501, %v453
      %v511 = vsub.f32 %v501, %v458
      %v512 = vsub.f32 %v501, %v463
      %v513 = vsub.f32 %v501, %v468
      %v514 = vsub.f32 %v501, %v473
      %v515 = vsub.f32 %v501, %v478
      %v516 = vsub.f32 %v501, %v483
      %v517 = vsub.f32 %v501, %v488
      %v518 = vsub.f32 %v501, %v493
      %519 = vmin.index.xlane.f32.xlu0 %v503
      %v520 = vpop.xlane.xlu0 %519
      %521 = vmin.index.xlane.f32.xlu0 %v504
      %v522 = vpop.xlane.xlu0 %521
      %523 = vmin.index.xlane.f32.xlu0 %v505
      %v524 = vpop.xlane.xlu0 %523
      %525 = vmin.index.xlane.f32.xlu0 %v506
      %v526 = vpop.xlane.xlu0 %525
      %527 = vmin.index.xlane.f32.xlu0 %v507
      %v528 = vpop.xlane.xlu0 %527
      %529 = vmin.index.xlane.f32.xlu0 %v508
      %v530 = vpop.xlane.xlu0 %529
      %531 = vmin.index.xlane.f32.xlu0 %v509
      %v532 = vpop.xlane.xlu0 %531
      %533 = vmin.index.xlane.f32.xlu0 %v510
      %v534 = vpop.xlane.xlu0 %533
      %535 = vmin.index.xlane.f32.xlu0 %v511
      %v536 = vpop.xlane.xlu0 %535
      %537 = vmin.index.xlane.f32.xlu0 %v512
      %v538 = vpop.xlane.xlu0 %537
      %539 = vmin.index.xlane.f32.xlu0 %v513
      %v540 = vpop.xlane.xlu0 %539
      %541 = vmin.index.xlane.f32.xlu0 %v514
      %v542 = vpop.xlane.xlu0 %541
      %543 = vmin.index.xlane.f32.xlu0 %v515
      %v544 = vpop.xlane.xlu0 %543
      %545 = vmin.index.xlane.f32.xlu0 %v516
      %v546 = vpop.xlane.xlu0 %545
      %547 = vmin.index.xlane.f32.xlu0 %v517
      %v548 = vpop.xlane.xlu0 %547
      %549 = vmin.index.xlane.f32.xlu0 %v518
      %v550 = vpop.xlane.xlu0 %549
      %v551 = vlaneseq
      %v552 = vand.u32 %v551, 127
      %vm553 = vcmp.eq.s32.totalorder %v552, %v520
      %vm554 = vcmp.eq.s32.totalorder %v552, %v522
      %vm555 = vcmp.eq.s32.totalorder %v552, %v524
      %vm556 = vcmp.eq.s32.totalorder %v552, %v526
      %vm557 = vcmp.eq.s32.totalorder %v552, %v528
      %vm558 = vcmp.eq.s32.totalorder %v552, %v530
      %vm559 = vcmp.eq.s32.totalorder %v552, %v532
      %vm560 = vcmp.eq.s32.totalorder %v552, %v534
      %vm561 = vcmp.eq.s32.totalorder %v552, %v536
      %vm562 = vcmp.eq.s32.totalorder %v552, %v538
      %vm563 = vcmp.eq.s32.totalorder %v552, %v540
      %vm564 = vcmp.eq.s32.totalorder %v552, %v542
      %vm565 = vcmp.eq.s32.totalorder %v552, %v544
      %vm566 = vcmp.eq.s32.totalorder %v552, %v546
      %vm567 = vcmp.eq.s32.totalorder %v552, %v548
      %vm568 = vcmp.eq.s32.totalorder %v552, %v550
      %v569 = vsel %vm553, 1, 0
      %v570 = vsel %vm554, 1, 0
      %v571 = vsel %vm555, 1, 0
      %v572 = vsel %vm556, 1, 0
      %v573 = vsel %vm557, 1, 0
      %v574 = vsel %vm558, 1, 0
      %v575 = vsel %vm559, 1, 0
      %v576 = vsel %vm560, 1, 0
      %v577 = vsel %vm561, 1, 0
      %v578 = vsel %vm562, 1, 0
      %v579 = vsel %vm563, 1, 0
      %v580 = vsel %vm564, 1, 0
      %v581 = vsel %vm565, 1, 0
      %v582 = vsel %vm566, 1, 0
      %v583 = vsel %vm567, 1, 0
      %v584 = vsel %vm568, 1, 0
      %v585 = vcvt.s32.f32 %v569
      %v586 = vcvt.s32.f32 %v570
      %v587 = vcvt.s32.f32 %v571
      %v588 = vcvt.s32.f32 %v572
      %v589 = vcvt.s32.f32 %v573
      %v590 = vcvt.s32.f32 %v574
      %v591 = vcvt.s32.f32 %v575
      %v592 = vcvt.s32.f32 %v576
      %v593 = vcvt.s32.f32 %v577
      %v594 = vcvt.s32.f32 %v578
      %v595 = vcvt.s32.f32 %v579
      %v596 = vcvt.s32.f32 %v580
      %v597 = vcvt.s32.f32 %v581
      %v598 = vcvt.s32.f32 %v582
      %v599 = vcvt.s32.f32 %v583
      %v600 = vcvt.s32.f32 %v584
      %v601 = vld [vmem:[%s4] sm:$0xff]
      %v602 = vld [vmem:[%s4 + $0x8] sm:$0xff]
      %v603 = vld [vmem:[%s4 + $0x10] sm:$0xff]
      %v604 = vld [vmem:[%s4 + $0x18] sm:$0xff]
      %v605 = vld [vmem:[%s4 + $0x20] sm:$0xff]
      %v606 = vld [vmem:[%s4 + $0x28] sm:$0xff]
      %v607 = vld [vmem:[%s4 + $0x30] sm:$0xff]
      %v608 = vld [vmem:[%s4 + $0x38] sm:$0xff]
      %v609 = vld [vmem:[%s4 + $0x40] sm:$0xff]
      %v610 = vld [vmem:[%s4 + $0x48] sm:$0xff]
      %v611 = vld [vmem:[%s4 + $0x50] sm:$0xff]
      %v612 = vld [vmem:[%s4 + $0x58] sm:$0xff]
      %v613 = vld [vmem:[%s4 + $0x60] sm:$0xff]
      %v614 = vld [vmem:[%s4 + $0x68] sm:$0xff]
      %v615 = vld [vmem:[%s4 + $0x70] sm:$0xff]
      %v616 = vld [vmem:[%s4 + $0x78] sm:$0xff]
      %617 = vmatprep.subr.mxu0 0.0
      %618 = vmatpush1.msra.mxu0 %v601
      %619 = vmatprep.subr.mxu0 0.0
      %620 = vmatpush1.msra.mxu0 %v602
      %621 = vmatprep.subr.mxu0 0.0
      %622 = vmatpush1.msra.mxu0 %v603
      %623 = vmatprep.subr.mxu0 0.0
      %624 = vmatpush1.msra.mxu0 %v604
      %625 = vmatprep.subr.mxu0 0.0
      %626 = vmatpush1.msra.mxu0 %v605
      %627 = vmatprep.subr.mxu0 0.0
      %628 = vmatpush1.msra.mxu0 %v606
      %629 = vmatprep.subr.mxu0 0.0
      %630 = vmatpush1.msra.mxu0 %v607
      %631 = vmatprep.subr.mxu0 0.0
      %632 = vmatpush1.msra.mxu0 %v608
      %633 = vmatprep.subr.mxu0 0.0
      %634 = vmatpush1.msra.mxu0 %v609
      %635 = vmatprep.subr.mxu0 0.0
      %636 = vmatpush1.msra.mxu0 %v610
      %637 = vmatprep.subr.mxu0 0.0
      %638 = vmatpush1.msra.mxu0 %v611
      %639 = vmatprep.subr.mxu0 0.0
      %640 = vmatpush1.msra.mxu0 %v612
      %641 = vmatprep.subr.mxu0 0.0
      %642 = vmatpush1.msra.mxu0 %v613
      %643 = vmatprep.subr.mxu0 0.0
      %644 = vmatpush1.msra.mxu0 %v614
      %645 = vmatprep.subr.mxu0 0.0
      %646 = vmatpush1.msra.mxu0 %v615
      %647 = vmatprep.subr.mxu0 0.0
      %648 = vmatpush1.msra.mxu0 %v616
      %649 = vmatprep.subr.mxu0 0.0
      %650 = vmatpush1.msra.mxu0 0.0
      %651 = vmatprep.subr.mxu0 0.0
      %652 = vmatpush1.msra.mxu0 0.0
      %653 = vmatprep.subr.mxu0 0.0
      %654 = vmatpush1.msra.mxu0 0.0
      %655 = vmatprep.subr.mxu0 0.0
      %656 = vmatpush1.msra.mxu0 0.0
      %657 = vmatprep.subr.mxu0 0.0
      %658 = vmatpush1.msra.mxu0 0.0
      %659 = vmatprep.subr.mxu0 0.0
      %660 = vmatpush1.msra.mxu0 0.0
      %661 = vmatprep.subr.mxu0 0.0
      %662 = vmatpush1.msra.mxu0 0.0
      %663 = vmatprep.subr.mxu0 0.0
      %664 = vmatpush1.msra.mxu0 0.0
      %665 = vmatprep.subr.mxu0 0.0
      %666 = vmatpush1.msra.mxu0 0.0
      %667 = vmatprep.subr.mxu0 0.0
      %668 = vmatpush1.msra.mxu0 0.0
      %669 = vmatprep.subr.mxu0 0.0
      %670 = vmatpush1.msra.mxu0 0.0
      %671 = vmatprep.subr.mxu0 0.0
      %672 = vmatpush1.msra.mxu0 0.0
      %673 = vmatprep.subr.mxu0 0.0
      %674 = vmatpush1.msra.mxu0 0.0
      %675 = vmatprep.subr.mxu0 0.0
      %676 = vmatpush1.msra.mxu0 0.0
      %677 = vmatprep.subr.mxu0 0.0
      %678 = vmatpush1.msra.mxu0 0.0
      %679 = vmatprep.subr.mxu0 0.0
      %680 = vmatpush1.msra.mxu0 0.0
      %681 = vmatprep.mubr.f32.mxu0 0.0
      %682 = vmatmul.mubr.f32.gmra.mrb[0].mxu0 %v585
      %v683 = vpop.f32.mrb[0].mxu0
      %v684 = vadd.f32 0.0, %v683
      %v685 = vpop.f32.mrb[0].mxu0
      %686 = vmatprep.mubr.f32.mxu0 0.0
      %687 = vmatmul.mubr.f32.gmra.mrb[0].mxu0 %v586
      %v688 = vpop.f32.mrb[0].mxu0
      %v689 = vadd.f32 0.0, %v688
      %v690 = vpop.f32.mrb[0].mxu0
      %691 = vmatprep.mubr.f32.mxu0 0.0
      %692 = vmatmul.mubr.f32.gmra.mrb[0].mxu0 %v587
      %v693 = vpop.f32.mrb[0].mxu0
      %v694 = vadd.f32 0.0, %v693
      %v695 = vpop.f32.mrb[0].mxu0
      %696 = vmatprep.mubr.f32.mxu0 0.0
      %697 = vmatmul.mubr.f32.gmra.mrb[0].mxu0 %v588
      %v698 = vpop.f32.mrb[0].mxu0
      %v699 = vadd.f32 0.0, %v698
      %v700 = vpop.f32.mrb[0].mxu0
      %701 = vmatprep.mubr.f32.mxu0 0.0
      %702 = vmatmul.mubr.f32.gmra.mrb[0].mxu0 %v589
      %v703 = vpop.f32.mrb[0].mxu0
      %v704 = vadd.f32 0.0, %v703
      %v705 = vpop.f32.mrb[0].mxu0
      %706 = vmatprep.mubr.f32.mxu0 0.0
      %707 = vmatmul.mubr.f32.gmra.mrb[0].mxu0 %v590
      %v708 = vpop.f32.mrb[0].mxu0
      %v709 = vadd.f32 0.0, %v708
      %v710 = vpop.f32.mrb[0].mxu0
      %711 = vmatprep.mubr.f32.mxu0 0.0
      %712 = vmatmul.mubr.f32.gmra.mrb[0].mxu0 %v591
      %v713 = vpop.f32.mrb[0].mxu0
      %v714 = vadd.f32 0.0, %v713
      %v715 = vpop.f32.mrb[0].mxu0
      %716 = vmatprep.mubr.f32.mxu0 0.0
      %717 = vmatmul.mubr.f32.gmra.mrb[0].mxu0 %v592
      %v718 = vpop.f32.mrb[0].mxu0
      %v719 = vadd.f32 0.0, %v718
      %v720 = vpop.f32.mrb[0].mxu0
      %721 = vmatprep.mubr.f32.mxu0 0.0
      %722 = vmatmul.mubr.f32.gmra.mrb[0].mxu0 %v593
      %v723 = vpop.f32.mrb[0].mxu0
      %v724 = vadd.f32 0.0, %v723
      %v725 = vpop.f32.mrb[0].mxu0
      %726 = vmatprep.mubr.f32.mxu0 0.0
      %727 = vmatmul.mubr.f32.gmra.mrb[0].mxu0 %v594
      %v728 = vpop.f32.mrb[0].mxu0
      %v729 = vadd.f32 0.0, %v728
      %v730 = vpop.f32.mrb[0].mxu0
      %731 = vmatprep.mubr.f32.mxu0 0.0
      %732 = vmatmul.mubr.f32.gmra.mrb[0].mxu0 %v595
      %v733 = vpop.f32.mrb[0].mxu0
      %v734 = vadd.f32 0.0, %v733
      %v735 = vpop.f32.mrb[0].mxu0
      %736 = vmatprep.mubr.f32.mxu0 0.0
      %737 = vmatmul.mubr.f32.gmra.mrb[0].mxu0 %v596
      %v738 = vpop.f32.mrb[0].mxu0
      %v739 = vadd.f32 0.0, %v738
      %v740 = vpop.f32.mrb[0].mxu0
      %741 = vmatprep.mubr.f32.mxu0 0.0
      %742 = vmatmul.mubr.f32.gmra.mrb[0].mxu0 %v597
      %v743 = vpop.f32.mrb[0].mxu0
      %v744 = vadd.f32 0.0, %v743
      %v745 = vpop.f32.mrb[0].mxu0
      %746 = vmatprep.mubr.f32.mxu0 0.0
      %747 = vmatmul.mubr.f32.gmra.mrb[0].mxu0 %v598
      %v748 = vpop.f32.mrb[0].mxu0
      %v749 = vadd.f32 0.0, %v748
      %v750 = vpop.f32.mrb[0].mxu0
      %751 = vmatprep.mubr.f32.mxu0 0.0
      %752 = vmatmul.mubr.f32.gmra.mrb[0].mxu0 %v599
      %v753 = vpop.f32.mrb[0].mxu0
      %v754 = vadd.f32 0.0, %v753
      %v755 = vpop.f32.mrb[0].mxu0
      %756 = vmatprep.mubr.f32.mxu0 0.0
      %757 = vmatmul.mubr.f32.gmra.mrb[0].mxu0 %v600
      %v758 = vpop.f32.mrb[0].mxu0
      %v759 = vadd.f32 0.0, %v758
      %v760 = vpop.f32.mrb[0].mxu0
      %761 = vdwg.mxu0
      %vm762 = vcmask 23552
      %763 = vst.msk [vmem:[%s248] sm:$0xff] %vm762, %v684
      %764 = vst.msk [vmem:[%s248 + $0x8] sm:$0xff] %vm762, %v689
      %765 = vst.msk [vmem:[%s248 + $0x10] sm:$0xff] %vm762, %v694
      %766 = vst.msk [vmem:[%s248 + $0x18] sm:$0xff] %vm762, %v699
      %767 = vst.msk [vmem:[%s248 + $0x20] sm:$0xff] %vm762, %v704
      %768 = vst.msk [vmem:[%s248 + $0x28] sm:$0xff] %vm762, %v709
      %769 = vst.msk [vmem:[%s248 + $0x30] sm:$0xff] %vm762, %v714
      %770 = vst.msk [vmem:[%s248 + $0x38] sm:$0xff] %vm762, %v719
      %771 = vst.msk [vmem:[%s248 + $0x40] sm:$0xff] %vm762, %v724
      %772 = vst.msk [vmem:[%s248 + $0x48] sm:$0xff] %vm762, %v729
      %773 = vst.msk [vmem:[%s248 + $0x50] sm:$0xff] %vm762, %v734
      %774 = vst.msk [vmem:[%s248 + $0x58] sm:$0xff] %vm762, %v739
      %775 = vst.msk [vmem:[%s248 + $0x60] sm:$0xff] %vm762, %v744
      %776 = vst.msk [vmem:[%s248 + $0x68] sm:$0xff] %vm762, %v749
      %777 = vst.msk [vmem:[%s248 + $0x70] sm:$0xff] %vm762, %v754
      %778 = vst.msk [vmem:[%s248 + $0x78] sm:$0xff] %vm762, %v759
      %s779 = smul.u32 16, %s16
      %p780 = scmp.lt.s32.totalorder %s779, 63
      %s781 = scalar_select %p780, %s779, 63
      %s782 = smul.addr %s781, 8
      %s783 = scalar_lea.vmem %s5, %s782
      // Predicated region
      $region41: #{tpu_custom_call.1} parent=39 // pred_check
        %p784 = pneg %p149
      $region42: #{tpu_custom_call.1} parent=39 // pred_check_branch
        %786 = sbr.rel (%p784) target = $region44
      $region43: #{tpu_custom_call.1} parent=39 // pred_region
        %s787 = smul.u32 16, %s16
      $region44: #{tpu_custom_call.1} parent=39 // pred_fallthru
        _
    $region40: #{tpu_custom_call.1} parent=5 // pred_fallthru
      _
    %p788 = scmp.le.s32.totalorder 2, %s11
    // Predicated region
    $region45: #{tpu_custom_call.1} parent=5 // pred_check
      %p789 = pneg %p788
    $region46: #{tpu_custom_call.1} parent=5 // pred_check_branch
      %791 = sbr.rel (%p789) target = $region48
    $region47: #{tpu_custom_call.1} parent=5 // pred_region
      %s792 = ssub.s32 %s11, 2
      // Predicated region
      $region49: #{tpu_custom_call.1} parent=47 // pred_check
        %p793 = pneg %p155
      $region50: #{tpu_custom_call.1} parent=47 // pred_check_branch
        %795 = sbr.rel (%p793) target = $region52
      $region51: #{tpu_custom_call.1} parent=47 // pred_region
        %s796 = smul.u32 16, %s17
        %p797 = scmp.lt.s32.totalorder %s796, 63
        %s798 = scalar_select %p797, %s796, 63
        %s799 = smul.addr %s798, 8
        %s800 = scalar_lea.vmem %s5, %s799
      $region52: #{tpu_custom_call.1} parent=47 // pred_fallthru
        _
    $region48: #{tpu_custom_call.1} parent=5 // pred_fallthru
      _
  $region6: #{tpu_custom_call.1} parent=0 // loop_footer
    %s15 = sadd.s32 1, %s11
  $region7: #{tpu_custom_call.1} parent=0 // loop_footer_branch
    %10 = sbr.rel target = $region3
  $region8: #{tpu_custom_call.1} parent=0 // loop_exit
    _

</llo_original>
